<compile_context>
chip_gen: v5e
topology: v5e:2x2
jax: 0.10.0
libtpu: 0.0.40
codegen_flags: <defaults>
</compile_context>

<pallas_src>
import jax
import jax.numpy as jnp
from jax.experimental import pallas as pl
from jax.experimental.pallas import tpu as pltpu


_SAMPLES_PER_ROW = 16       # 16 samples * 8 features = 128 lanes per packed row
_MAX_ROWS_PER_TILE = 2048   # 2048 rows * 128 lanes * 4 B = 1 MiB input block/step
                            #   -> 32768 samples per grid step


def _block_diag(w, reps):
    """(din, dout) -> (reps*din, reps*dout) block-diagonal replication of w."""
    din, dout = w.shape
    eye = jnp.eye(reps, dtype=jnp.float32)
    bd = jnp.einsum("ij,kl->ikjl", eye, w.astype(jnp.float32))
    return bd.reshape(reps * din, reps * dout)


def _mlp_kernel(x_ref, w1_ref, b1_ref, w2_ref, b2_ref, w3_ref, b3_ref, o_ref):
    """Fused 3-layer MLP on a (TR, 128) tile of 16-sample packed rows.

    x_ref : (TR, 128)   w1_ref: (128, 96)  b1_ref: (1, 96)
                        w2_ref: ( 96, 64)  b2_ref: (1, 64)
                        w3_ref: ( 64, 16)  b3_ref: (1, 16)
    o_ref : (TR, 16)    (sample s = row*16 + slot lives at column `slot`)
    """
    x = x_ref[...]                                                     # (TR,128)
    h = jax.nn.sigmoid(
        jnp.dot(x, w1_ref[...], preferred_element_type=jnp.float32)
        + b1_ref[...])                                                 # (TR, 96)
    h = jax.nn.sigmoid(
        jnp.dot(h, w2_ref[...], preferred_element_type=jnp.float32)
        + b2_ref[...])                                                 # (TR, 64)
    h = (jnp.dot(h, w3_ref[...], preferred_element_type=jnp.float32)
         + b3_ref[...])                                                # (TR, 16)
    o_ref[...] = jax.nn.sigmoid(h).astype(o_ref.dtype)


def mlp_forward(x, params):
    """x: (B, 8) float32 -> (B, 1) float32 (same semantics as the PyTorch Model)."""
    w1, b1, w2, b2, w3, b3 = params          # PyTorch layout: W (out,in), b (out,)
    B = x.shape[0]
    x = x.astype(jnp.float32)

    # --- adaptive tiling: near-equal row tiles <= 2048, rounded to 8 sublanes ---
    R = -(-B // _SAMPLES_PER_ROW)                 # packed rows needed
    G = max(1, -(-R // _MAX_ROWS_PER_TILE))       # grid steps
    TR = ((-(-R // G) + 7) // 8) * 8              # rows per tile (multiple of 8)
    Rp = G * TR                                   # padded row count
    Bp = Rp * _SAMPLES_PER_ROW                    # padded sample count

    if Bp != B:                                   # pad < 128 samples per grid step
        x = jnp.pad(x, ((0, Bp - B), (0, 0)))
    x128 = x.reshape(Rp, 128)                     # free row-major reshape

    # --- block-diagonal weight slabs + tiled biases (built once, ~80 KiB) ------
    w1bd = _block_diag(w1.T, _SAMPLES_PER_ROW)    # (128, 96)
    w2bd = _block_diag(w2.T, _SAMPLES_PER_ROW)    # ( 96, 64)
    w3bd = _block_diag(w3.T, _SAMPLES_PER_ROW)    # ( 64, 16)
    b1t = jnp.tile(b1.astype(jnp.float32), _SAMPLES_PER_ROW)[None, :]   # (1, 96)
    b2t = jnp.tile(b2.astype(jnp.float32), _SAMPLES_PER_ROW)[None, :]   # (1, 64)
    b3t = jnp.tile(b3.astype(jnp.float32), _SAMPLES_PER_ROW)[None, :]   # (1, 16)

    resident = lambda i: (0, 0)                   # params stay VMEM-resident

    out = pl.pallas_call(
        _mlp_kernel,
        out_shape=jax.ShapeDtypeStruct((Rp, 16), jnp.float32),
        grid=(G,),
        in_specs=[
            pl.BlockSpec((TR, 128), lambda i: (i, 0)),   # x tile: advances
            pl.BlockSpec((128, 96), resident),
            pl.BlockSpec((1, 96), resident),
            pl.BlockSpec((96, 64), resident),
            pl.BlockSpec((1, 64), resident),
            pl.BlockSpec((64, 16), resident),
            pl.BlockSpec((1, 16), resident),
        ],
        out_specs=pl.BlockSpec((TR, 16), lambda i: (i, 0)),
        compiler_params=pltpu.CompilerParams(
            dimension_semantics=("parallel",)),
    )(x128, w1bd, b1t, w2bd, b2t, w3bd, b3t)

    # (Rp,16) -> (Bp,1) is a free row-major reshape; slice off the pad tail.
    return out.reshape(Bp, 1)[:B]


def init_params(key):
    """PyTorch nn.Linear-style shapes/init: W (out, in), b (out,)."""
    dims = [(8, 6), (6, 4), (4, 1)]
    params = []
    for i, (din, dout) in enumerate(dims):
        kw, kb = jax.random.split(jax.random.fold_in(key, i))
        bound = 1.0 / (din ** 0.5)
        w = jax.random.uniform(kw, (dout, din), jnp.float32, -bound, bound)
        b = jax.random.uniform(kb, (dout,), jnp.float32, -bound, bound)
        params += [w, b]
    return tuple(params)


def _reference_forward(x, params):
    """Pure-JAX reference (mirrors the PyTorch forward exactly)."""
    w1, b1, w2, b2, w3, b3 = params
    h = jax.nn.sigmoid(x @ w1.T + b1)
    h = jax.nn.sigmoid(h @ w2.T + b2)
    return jax.nn.sigmoid(h @ w3.T + b3)


if __name__ == "__main__":
    key = jax.random.PRNGKey(0)
    kx, kp = jax.random.split(key)
    params = init_params(kp)

    # Small demo shape consistent with the module (batch=8, in_features=8).
    batch = 8
    x = jax.random.normal(kx, (batch, 8), jnp.float32)
    out = jax.block_until_ready(mlp_forward(x, params))
    ref = _reference_forward(x, params)
    assert out.shape == (batch, 1), out.shape
    assert jnp.allclose(out, ref, atol=1e-5, rtol=1e-5), "mismatch vs reference (B=8)"

    # Second check with a batch that is not a multiple of 16/128 (exercises the
    # ragged-tail padding path) — still tiny and fast.
    batch2 = 300
    x2 = jax.random.normal(jax.random.fold_in(kx, 1), (batch2, 8), jnp.float32)
    out2 = jax.block_until_ready(mlp_forward(x2, params))
    ref2 = _reference_forward(x2, params)
    assert out2.shape == (batch2, 1), out2.shape
    assert jnp.allclose(out2, ref2, atol=1e-5, rtol=1e-5), "mismatch vs reference (B=300)"

    print("KERNEL_OK")
</pallas_src>

<mosaic_0001>
module attributes {stable_mosaic.version = 11 : i64} {
  func.func @_mlp_kernel(%arg0: i32, %arg1: memref<8x128xf32, #tpu.memory_space<vmem>>, %arg2: memref<128x96xf32, #tpu.memory_space<vmem>>, %arg3: memref<1x96xf32, #tpu.memory_space<vmem>>, %arg4: memref<96x64xf32, #tpu.memory_space<vmem>>, %arg5: memref<1x64xf32, #tpu.memory_space<vmem>>, %arg6: memref<64x16xf32, #tpu.memory_space<vmem>>, %arg7: memref<1x16xf32, #tpu.memory_space<vmem>>, %arg8: memref<8x16xf32, #tpu.memory_space<vmem>>) attributes {dimension_semantics = [#tpu.dimension_semantics<parallel>], iteration_bounds = array<i64: 1>, scalar_prefetch = 0 : i64, scratch_operands = 0 : i64, tpu.core_type = #tpu.core_type<tc>, window_params = [{transform_indices = @transform_0, window_bounds = array<i64: 8, 128>}, {pipeline_mode = #tpu.pipeline_mode<synchronous>, transform_indices = @transform_1, window_bounds = array<i64: 128, 96>}, {pipeline_mode = #tpu.pipeline_mode<synchronous>, transform_indices = @transform_2, window_bounds = array<i64: 1, 96>}, {pipeline_mode = #tpu.pipeline_mode<synchronous>, transform_indices = @transform_3, window_bounds = array<i64: 96, 64>}, {pipeline_mode = #tpu.pipeline_mode<synchronous>, transform_indices = @transform_4, window_bounds = array<i64: 1, 64>}, {pipeline_mode = #tpu.pipeline_mode<synchronous>, transform_indices = @transform_5, window_bounds = array<i64: 64, 16>}, {pipeline_mode = #tpu.pipeline_mode<synchronous>, transform_indices = @transform_6, window_bounds = array<i64: 1, 16>}, {transform_indices = @transform_7, window_bounds = array<i64: 8, 16>}]} {
    %c0 = arith.constant 0 : index
    %c0_0 = arith.constant 0 : index
    %0 = vector.load %arg1[%c0, %c0_0] : memref<8x128xf32, #tpu.memory_space<vmem>>, vector<8x128xf32>
    %c0_1 = arith.constant 0 : index
    %c0_2 = arith.constant 0 : index
    %1 = vector.load %arg2[%c0_1, %c0_2] : memref<128x96xf32, #tpu.memory_space<vmem>>, vector<128x96xf32>
    %cst = arith.constant dense<0.000000e+00> : vector<8x96xf32>
    %2 = tpu.matmul %0, %1, %cst {dimension_numbers = #tpu.dot_dimension_numbers<[1], [0], [0], [1], [0, 0, 1, 1], [], []>} : vector<8x128xf32>, vector<128x96xf32>, vector<8x96xf32> -> vector<8x96xf32>
    %c0_3 = arith.constant 0 : index
    %c0_4 = arith.constant 0 : index
    %3 = vector.load %arg3[%c0_3, %c0_4] : memref<1x96xf32, #tpu.memory_space<vmem>>, vector<1x96xf32>
    %4 = vector.broadcast %3 : vector<1x96xf32> to vector<8x96xf32>
    %5 = arith.addf %2, %4 : vector<8x96xf32>
    %6 = arith.negf %5 : vector<8x96xf32>
    %7 = math.exp %6 : vector<8x96xf32>
    %cst_5 = arith.constant 1.000000e+00 : f32
    %8 = vector.broadcast %cst_5 : f32 to vector<8x96xf32>
    %9 = arith.addf %8, %7 : vector<8x96xf32>
    %10 = arith.divf %8, %9 : vector<8x96xf32>
    %c0_6 = arith.constant 0 : index
    %c0_7 = arith.constant 0 : index
    %11 = vector.load %arg4[%c0_6, %c0_7] : memref<96x64xf32, #tpu.memory_space<vmem>>, vector<96x64xf32>
    %cst_8 = arith.constant dense<0.000000e+00> : vector<8x64xf32>
    %12 = tpu.matmul %10, %11, %cst_8 {dimension_numbers = #tpu.dot_dimension_numbers<[1], [0], [0], [1], [0, 0, 1, 1], [], []>} : vector<8x96xf32>, vector<96x64xf32>, vector<8x64xf32> -> vector<8x64xf32>
    %c0_9 = arith.constant 0 : index
    %c0_10 = arith.constant 0 : index
    %13 = vector.load %arg5[%c0_9, %c0_10] : memref<1x64xf32, #tpu.memory_space<vmem>>, vector<1x64xf32>
    %14 = vector.broadcast %13 : vector<1x64xf32> to vector<8x64xf32>
    %15 = arith.addf %12, %14 : vector<8x64xf32>
    %16 = arith.negf %15 : vector<8x64xf32>
    %17 = math.exp %16 : vector<8x64xf32>
    %cst_11 = arith.constant 1.000000e+00 : f32
    %18 = vector.broadcast %cst_11 : f32 to vector<8x64xf32>
    %19 = arith.addf %18, %17 : vector<8x64xf32>
    %20 = arith.divf %18, %19 : vector<8x64xf32>
    %c0_12 = arith.constant 0 : index
    %c0_13 = arith.constant 0 : index
    %21 = vector.load %arg6[%c0_12, %c0_13] : memref<64x16xf32, #tpu.memory_space<vmem>>, vector<64x16xf32>
    %cst_14 = arith.constant dense<0.000000e+00> : vector<8x16xf32>
    %22 = tpu.matmul %20, %21, %cst_14 {dimension_numbers = #tpu.dot_dimension_numbers<[1], [0], [0], [1], [0, 0, 1, 1], [], []>} : vector<8x64xf32>, vector<64x16xf32>, vector<8x16xf32> -> vector<8x16xf32>
    %c0_15 = arith.constant 0 : index
    %c0_16 = arith.constant 0 : index
    %23 = vector.load %arg7[%c0_15, %c0_16] : memref<1x16xf32, #tpu.memory_space<vmem>>, vector<1x16xf32>
    %24 = vector.broadcast %23 : vector<1x16xf32> to vector<8x16xf32>
    %25 = arith.addf %22, %24 : vector<8x16xf32>
    %26 = arith.negf %25 : vector<8x16xf32>
    %27 = math.exp %26 : vector<8x16xf32>
    %cst_17 = arith.constant 1.000000e+00 : f32
    %28 = vector.broadcast %cst_17 : f32 to vector<8x16xf32>
    %29 = arith.addf %28, %27 : vector<8x16xf32>
    %30 = arith.divf %28, %29 : vector<8x16xf32>
    %c0_18 = arith.constant 0 : index
    %c0_19 = arith.constant 0 : index
    %31 = vector.load %arg8[%c0_18, %c0_19] : memref<8x16xf32, #tpu.memory_space<vmem>>, vector<8x16xf32>
    tpu.vector_store %arg8[%c0_18, %c0_19], %30 {strides = array<i32>} : memref<8x16xf32, #tpu.memory_space<vmem>>, vector<8x16xf32>,
    return
  }
  func.func @transform_0(%arg0: i32) -> (i32, i32) {
    %c0_i32 = arith.constant 0 : i32
    %c0_i32_0 = arith.constant 0 : i32
    return %arg0, %c0_i32 : i32, i32
  }
  func.func @transform_1(%arg0: i32) -> (i32, i32) {
    %c0_i32 = arith.constant 0 : i32
    %c0_i32_0 = arith.constant 0 : i32
    %c0_i32_1 = arith.constant 0 : i32
    return %c0_i32, %c0_i32_0 : i32, i32
  }
  func.func @transform_2(%arg0: i32) -> (i32, i32) {
    %c0_i32 = arith.constant 0 : i32
    %c0_i32_0 = arith.constant 0 : i32
    %c0_i32_1 = arith.constant 0 : i32
    return %c0_i32, %c0_i32_0 : i32, i32
  }
  func.func @transform_3(%arg0: i32) -> (i32, i32) {
    %c0_i32 = arith.constant 0 : i32
    %c0_i32_0 = arith.constant 0 : i32
    %c0_i32_1 = arith.constant 0 : i32
    return %c0_i32, %c0_i32_0 : i32, i32
  }
  func.func @transform_4(%arg0: i32) -> (i32, i32) {
    %c0_i32 = arith.constant 0 : i32
    %c0_i32_0 = arith.constant 0 : i32
    %c0_i32_1 = arith.constant 0 : i32
    return %c0_i32, %c0_i32_0 : i32, i32
  }
  func.func @transform_5(%arg0: i32) -> (i32, i32) {
    %c0_i32 = arith.constant 0 : i32
    %c0_i32_0 = arith.constant 0 : i32
    %c0_i32_1 = arith.constant 0 : i32
    return %c0_i32, %c0_i32_0 : i32, i32
  }
  func.func @transform_6(%arg0: i32) -> (i32, i32) {
    %c0_i32 = arith.constant 0 : i32
    %c0_i32_0 = arith.constant 0 : i32
    %c0_i32_1 = arith.constant 0 : i32
    return %c0_i32, %c0_i32_0 : i32, i32
  }
  func.func @transform_7(%arg0: i32) -> (i32, i32) {
    %c0_i32 = arith.constant 0 : i32
    %c0_i32_0 = arith.constant 0 : i32
    return %arg0, %c0_i32 : i32, i32
  }
}

</mosaic_0001>

<llo_original>
// kernel: tpu_custom_call.1
$region0: #{tpu_custom_call.1}
  #allocation0 [shape = 'u32[]', space=smem, size = 0x4, offset = 0x4, fixed_abs, tag = 'smem constant byte address 0x4 - core index']
  #allocation1 [shape = 'u32[72,128]{1,0:T(1,128)}', space=vmem, size = 0x9000, scoped, tag = 'internal scratch']
  %s0 = inlined_call_operand.vmem [shape: f32[8,128], index: 0, kind: input, shape index: {}]
  %s1 = inlined_call_operand.vmem [shape: f32[128,96], index: 1, kind: input, shape index: {}]
  %s2 = inlined_call_operand.vmem [shape: f32[1,96], index: 2, kind: input, shape index: {}]
  %s3 = inlined_call_operand.vmem [shape: f32[96,64], index: 3, kind: input, shape index: {}]
  %s4 = inlined_call_operand.vmem [shape: f32[1,64], index: 4, kind: input, shape index: {}]
  %s5 = inlined_call_operand.vmem [shape: f32[64,16], index: 5, kind: input, shape index: {}]
  %s6 = inlined_call_operand.vmem [shape: f32[1,16], index: 6, kind: input, shape index: {}]
  %s7 = inlined_call_operand.hbm [shape: f32[8,16], index: 7, kind: output, shape index: {}]
  %s8 = sld [smem:[#allocation0]]
  $region38: #{tpu_custom_call.1} parent=0
    _
  %s10 = ssub.s32 1, %s8
  %s11 = scalar_select 0, %s10, %s8
  $region1: #{tpu_custom_call.1} parent=0
    #allocation2 [shape = 'u8[4096]{0}', space=vmem, size = 0x1000, scoped, tag = 'output window, operand 0, single buffered']
    #allocation3 [shape = 's32[1]{0}', space=sflag, size = 0x4, scoped, tag = 'scoped memory for tpu_custom_call.1']
    %12 = vsyncpa [#allocation3], 0
    // Predicated region
    $region2: #{tpu_custom_call.1} parent=1 // pred_check
      _
    $region3: #{tpu_custom_call.1} parent=1 // pred_check_branch
      %14 = sbr.rel (0) target = $region5
    $region4: #{tpu_custom_call.1} parent=1 // pred_region
      _
    $region5: #{tpu_custom_call.1} parent=1 // pred_fallthru
      _
    // Predicated region
    $region6: #{tpu_custom_call.1} parent=1 // pred_check
      _
    $region7: #{tpu_custom_call.1} parent=1 // pred_check_branch
      %16 = sbr.rel (0) target = $region9
    $region8: #{tpu_custom_call.1} parent=1 // pred_region
      _
    $region9: #{tpu_custom_call.1} parent=1 // pred_fallthru
      _
    // Predicated region
    $region10: #{tpu_custom_call.1} parent=1 // pred_check
      _
    $region11: #{tpu_custom_call.1} parent=1 // pred_check_branch
      %18 = sbr.rel (0) target = $region13
    $region12: #{tpu_custom_call.1} parent=1 // pred_region
      _
    $region13: #{tpu_custom_call.1} parent=1 // pred_fallthru
      _
    // Predicated region
    $region14: #{tpu_custom_call.1} parent=1 // pred_check
      _
    $region15: #{tpu_custom_call.1} parent=1 // pred_check_branch
      %20 = sbr.rel (0) target = $region17
    $region16: #{tpu_custom_call.1} parent=1 // pred_region
      _
    $region17: #{tpu_custom_call.1} parent=1 // pred_fallthru
      _
    // Predicated region
    $region18: #{tpu_custom_call.1} parent=1 // pred_check
      _
    $region19: #{tpu_custom_call.1} parent=1 // pred_check_branch
      %22 = sbr.rel (0) target = $region21
    $region20: #{tpu_custom_call.1} parent=1 // pred_region
      _
    $region21: #{tpu_custom_call.1} parent=1 // pred_fallthru
      _
    // Predicated region
    $region22: #{tpu_custom_call.1} parent=1 // pred_check
      _
    $region23: #{tpu_custom_call.1} parent=1 // pred_check_branch
      %24 = sbr.rel (0) target = $region25
    $region24: #{tpu_custom_call.1} parent=1 // pred_region
      _
    $region25: #{tpu_custom_call.1} parent=1 // pred_fallthru
      _
    // Predicated region
    $region26: #{tpu_custom_call.1} parent=1 // pred_check
      _
    $region27: #{tpu_custom_call.1} parent=1 // pred_check_branch
      %26 = sbr.rel (0) target = $region29
    $region28: #{tpu_custom_call.1} parent=1 // pred_region
      _
    $region29: #{tpu_custom_call.1} parent=1 // pred_fallthru
      _
    %v27 = vld [vmem:[%s0] sm:$0xff]
    %v28 = vld [vmem:[%s1] sm:$0xff]
    %v29 = vld [vmem:[%s1 + $0x8] sm:$0xff]
    %v30 = vld [vmem:[%s1 + $0x10] sm:$0xff]
    %v31 = vld [vmem:[%s1 + $0x18] sm:$0xff]
    %v32 = vld [vmem:[%s1 + $0x20] sm:$0xff]
    %v33 = vld [vmem:[%s1 + $0x28] sm:$0xff]
    %v34 = vld [vmem:[%s1 + $0x30] sm:$0xff]
    %v35 = vld [vmem:[%s1 + $0x38] sm:$0xff]
    %v36 = vld [vmem:[%s1 + $0x40] sm:$0xff]
    %v37 = vld [vmem:[%s1 + $0x48] sm:$0xff]
    %v38 = vld [vmem:[%s1 + $0x50] sm:$0xff]
    %v39 = vld [vmem:[%s1 + $0x58] sm:$0xff]
    %v40 = vld [vmem:[%s1 + $0x60] sm:$0xff]
    %v41 = vld [vmem:[%s1 + $0x68] sm:$0xff]
    %v42 = vld [vmem:[%s1 + $0x70] sm:$0xff]
    %v43 = vld [vmem:[%s1 + $0x78] sm:$0xff]
    %v44 = vld [vmem:[%s2] sm:$0x1]
    %v46 = vperm.slane %v44, 0
    %48 = vmatpush.msra.mxu0 %v43
    %49 = vmatpush.msra.mxu0 %v42
    %50 = vmatpush.msra.mxu0 %v41
    %51 = vmatpush.msra.mxu0 %v40
    %52 = vmatpush.msra.mxu0 %v39
    %53 = vmatpush.msra.mxu0 %v38
    %54 = vmatpush.msra.mxu0 %v37
    %55 = vmatpush.msra.mxu0 %v36
    %56 = vmatpush.msra.mxu0 %v35
    %57 = vmatpush.msra.mxu0 %v34
    %58 = vmatpush.msra.mxu0 %v33
    %59 = vmatpush.msra.mxu0 %v32
    %60 = vmatpush.msra.mxu0 %v31
    %61 = vmatpush.msra.mxu0 %v30
    %62 = vmatpush.msra.mxu0 %v29
    %63 = vmatpush.msra.mxu0 %v28
    %64 = vmatmul.f32.gmra.mxu0 %v27
    %v65 = vpop.f32.mrf.mxu0
    %v66 = vadd.f32 %v46, %v65
    %67 = vdwg.mxu0
    %v68 = vxor.u32 %v66, 2147483648
    %v69 = vmul.f32 %v68, 1.442695
    %v70 = vpow.pop %v69
    %v71 = vadd.f32 %v70, 1.0
    %v72 = vrcp.pop %v71
    %v73 = vmul.f32 %v71, %v72
    %v74 = vsub.f32 1.0, %v73
    %v75 = vmul.f32 %v72, %v74
    %v76 = vadd.f32 %v72, %v75
    %vm77 = vweird.f32 %v71
    %vm78 = vweird.f32 %v72
    %vm79 = vmor %vm77, %vm78
    %v80 = vsel %vm79, %v72, %v76
    %v81 = vand.u32 2147483647, %v71
    %vm82 = vcmp.eq.f32.partialorder %v81, 8.507059e+37
    %v83 = vand.u32 %v71, 2147483648
    %v84 = vor.u32 1.1754944e-38, %v83
    %v85 = vsel %vm82, %v84, %v80
    %v86 = vmul.f32 1.0, %v85
    %v87 = vld [vmem:[%s3] sm:$0xff]
    %v88 = vld [vmem:[%s3 + $0x8] sm:$0xff]
    %v89 = vld [vmem:[%s3 + $0x10] sm:$0xff]
    %v90 = vld [vmem:[%s3 + $0x18] sm:$0xff]
    %v91 = vld [vmem:[%s3 + $0x20] sm:$0xff]
    %v92 = vld [vmem:[%s3 + $0x28] sm:$0xff]
    %v93 = vld [vmem:[%s3 + $0x30] sm:$0xff]
    %v94 = vld [vmem:[%s3 + $0x38] sm:$0xff]
    %v95 = vld [vmem:[%s3 + $0x40] sm:$0xff]
    %v96 = vld [vmem:[%s3 + $0x48] sm:$0xff]
    %v97 = vld [vmem:[%s3 + $0x50] sm:$0xff]
    %v98 = vld [vmem:[%s3 + $0x58] sm:$0xff]
    %v99 = vld [vmem:[%s4] sm:$0x1]
    %v101 = vperm.slane %v99, 0
    %vm103 = vcmask 785408
    %v105 = vsel %vm103, %v86, 0
    %107 = vmatpush.msra.mxu0 0.0
    %108 = vmatpush.msra.mxu0 0.0
    %109 = vmatpush.msra.mxu0 0.0
    %110 = vmatpush.msra.mxu0 0.0
    %111 = vmatpush.msra.mxu0 %v98
    %112 = vmatpush.msra.mxu0 %v97
    %113 = vmatpush.msra.mxu0 %v96
    %114 = vmatpush.msra.mxu0 %v95
    %115 = vmatpush.msra.mxu0 %v94
    %116 = vmatpush.msra.mxu0 %v93
    %117 = vmatpush.msra.mxu0 %v92
    %118 = vmatpush.msra.mxu0 %v91
    %119 = vmatpush.msra.mxu0 %v90
    %120 = vmatpush.msra.mxu0 %v89
    %121 = vmatpush.msra.mxu0 %v88
    %122 = vmatpush.msra.mxu0 %v87
    %123 = vmatmul.f32.gmra.mxu0 %v105
    %v124 = vpop.f32.mrf.mxu0
    %v125 = vadd.f32 %v101, %v124
    %126 = vdwg.mxu0
    %v127 = vxor.u32 %v125, 2147483648
    %v128 = vmul.f32 %v127, 1.442695
    %v129 = vpow.pop %v128
    %v130 = vadd.f32 %v129, 1.0
    %v131 = vrcp.pop %v130
    %v132 = vmul.f32 %v130, %v131
    %v133 = vsub.f32 1.0, %v132
    %v134 = vmul.f32 %v131, %v133
    %v135 = vadd.f32 %v131, %v134
    %vm136 = vweird.f32 %v130
    %vm137 = vweird.f32 %v131
    %vm138 = vmor %vm136, %vm137
    %v139 = vsel %vm138, %v131, %v135
    %v140 = vand.u32 2147483647, %v130
    %vm141 = vcmp.eq.f32.partialorder %v140, 8.507059e+37
    %v142 = vand.u32 %v130, 2147483648
    %v143 = vor.u32 1.1754944e-38, %v142
    %v144 = vsel %vm141, %v143, %v139
    %v145 = vmul.f32 1.0, %v144
    %v146 = vld [vmem:[%s5] sm:$0xff]
    %v147 = vld [vmem:[%s5 + $0x8] sm:$0xff]
    %v148 = vld [vmem:[%s5 + $0x10] sm:$0xff]
    %v149 = vld [vmem:[%s5 + $0x18] sm:$0xff]
    %v150 = vld [vmem:[%s5 + $0x20] sm:$0xff]
    %v151 = vld [vmem:[%s5 + $0x28] sm:$0xff]
    %v152 = vld [vmem:[%s5 + $0x30] sm:$0xff]
    %v153 = vld [vmem:[%s5 + $0x38] sm:$0xff]
    %v154 = vld [vmem:[%s6] sm:$0x1]
    %v156 = vperm.slane %v154, 0
    %vm158 = vcmask 523264
    %v160 = vsel %vm158, %v145, 0
    %162 = vmatpush.msra.mxu0 0.0
    %163 = vmatpush.msra.mxu0 0.0
    %164 = vmatpush.msra.mxu0 0.0
    %165 = vmatpush.msra.mxu0 0.0
    %166 = vmatpush.msra.mxu0 0.0
    %167 = vmatpush.msra.mxu0 0.0
    %168 = vmatpush.msra.mxu0 0.0
    %169 = vmatpush.msra.mxu0 0.0
    %170 = vmatpush.msra.mxu0 %v153
    %171 = vmatpush.msra.mxu0 %v152
    %172 = vmatpush.msra.mxu0 %v151
    %173 = vmatpush.msra.mxu0 %v150
    %174 = vmatpush.msra.mxu0 %v149
    %175 = vmatpush.msra.mxu0 %v148
    %176 = vmatpush.msra.mxu0 %v147
    %177 = vmatpush.msra.mxu0 %v146
    %178 = vmatmul.f32.gmra.mxu0 %v160
    %v179 = vpop.f32.mrf.mxu0
    %v180 = vadd.f32 %v156, %v179
    %181 = vdwg.mxu0
    %v182 = vxor.u32 %v180, 2147483648
    %v183 = vmul.f32 %v182, 1.442695
    %v184 = vpow.pop %v183
    %v185 = vadd.f32 %v184, 1.0
    %v186 = vrcp.pop %v185
    %v187 = vmul.f32 %v185, %v186
    %v188 = vsub.f32 1.0, %v187
    %v189 = vmul.f32 %v186, %v188
    %v190 = vadd.f32 %v186, %v189
    %vm191 = vweird.f32 %v185
    %vm192 = vweird.f32 %v186
    %vm193 = vmor %vm191, %vm192
    %v194 = vsel %vm193, %v186, %v190
    %v195 = vand.u32 2147483647, %v185
    %vm196 = vcmp.eq.f32.partialorder %v195, 8.507059e+37
    %v197 = vand.u32 %v185, 2147483648
    %v198 = vor.u32 1.1754944e-38, %v197
    %v199 = vsel %vm196, %v198, %v194
    %v200 = vmul.f32 1.0, %v199
    %vm201 = vcmask 130048
    %202 = vst.msk [vmem:[#allocation2] sm:$0xff] %vm201, %v200
    // Predicated region
    $region30: #{tpu_custom_call.1} parent=1 // pred_check
      _
    $region31: #{tpu_custom_call.1} parent=1 // pred_check_branch
      %204 = sbr.rel (0) target = $region33
    $region32: #{tpu_custom_call.1} parent=1 // pred_region
      %206 = vsyncadd [#allocation3], 0
      %s208 = sshll.u32 [#allocation2], 4
      %s209 = int_to_ptr.vmem [resolvable:$true] %s208
      %s210 = sshll.u32 %s7, 4
      %s211 = int_to_ptr.hbm [resolvable:$true] %s210
      %213 = dma.vmem_to_hbm [thread:$0]  %s209, 128, %s211, [#allocation3]
    $region33: #{tpu_custom_call.1} parent=1 // pred_fallthru
      _
    // Predicated region
    $region34: #{tpu_custom_call.1} parent=1 // pred_check
      _
    $region35: #{tpu_custom_call.1} parent=1 // pred_check_branch
      %215 = sbr.rel (0) target = $region37
    $region36: #{tpu_custom_call.1} parent=1 // pred_region
      %217 = dma.done [#allocation3], 128
    $region37: #{tpu_custom_call.1} parent=1 // pred_fallthru
      _
    %218 = vsyncpa [#allocation3], 1

</llo_original>
